<compile_context>
chip_gen: v7x
topology: tpu7x:2x2x1
jax: 0.10.0
libtpu: 0.0.40
codegen_flags: <defaults>
</compile_context>

<pallas_src>
import jax
import jax.numpy as jnp
from jax import lax
from jax.experimental import pallas as pl
from jax.experimental.pallas import tpu as pltpu

_LANE = 128
_MiB = 1024 * 1024


def _round_up(v, m):
    return ((v + m - 1) // m) * m


def _vmem_budget():
    """(input-block byte budget, vmem_limit_bytes) — TPU-generation aware."""
    try:
        vmem_cap = int(pltpu.get_tpu_info().vmem_capacity_bytes)
    except Exception:
        vmem_cap = 64 * _MiB                       # assume the smallest (v7x)
    if vmem_cap >= 128 * _MiB:                     # v5e / v6e
        return 16 * _MiB, 64 * _MiB
    return 8 * _MiB, 48 * _MiB                     # v7x (64 MiB physical VMEM)


def _select_tiles(N, C, HW, itemsize, budget):
    """Pick (c_tile, hw_tile).

    Legality: c_tile is either C (full extent) or a multiple of 128, which is
    valid both on the input sublane axis (needs 8/16/32) and on the lane axis
    of the lane-dense (1, 2, c_tile) output block (needs 128 or full C).
    hw_tile is either HW (full extent) or a multiple of 128.
    """
    row_bytes = HW * itemsize

    if C * row_bytes <= budget:
        # (a) whole image fits: one contiguous block per image, k-grid == 1.
        c_tile, hw_tile = C, HW
    elif budget // row_bytes >= _LANE:
        # (b) full HW fits for >= 128 channel rows: tile channels only.
        c_tile = (budget // row_bytes) // _LANE * _LANE
        hw_tile = HW
    else:
        # (c) HW itself too large for the budget: minimal legal channel group,
        # large 128-aligned HW chunks; ragged tail masked in-kernel.
        c_tile = C if C < _LANE else _LANE
        hw_budget = budget // (c_tile * itemsize)
        hw_tile = max(_LANE, hw_budget // _LANE * _LANE)
        hw_tile = min(hw_tile, HW)                 # never exceed the array dim

    # v7x has two TensorCores: avoid a 1-cell / odd "parallel" grid when the
    # channels can be split into two 128-aligned groups.
    n_par = N * pl.cdiv(C, c_tile)
    if n_par % 2 == 1 and c_tile == C and C >= 2 * _LANE:
        c_tile = _round_up(pl.cdiv(C, 2), _LANE)

    return c_tile, hw_tile


def _make_kernel(HW, hw_tile, needs_mask, lane_dense):
    inv_hw = 1.0 / HW

    def _block_reduce(x_ref, k):
        """One (c_tile, hw_tile) block -> per-channel (max, sum), (c_tile, 1) f32."""
        blk = x_ref[0].astype(jnp.float32)
        if needs_mask:
            lane = lax.broadcasted_iota(jnp.int32, blk.shape, 1)
            valid = (k * hw_tile + lane) < HW
            blk_max = jnp.where(valid, blk, -jnp.inf)
            blk_sum = jnp.where(valid, blk, 0.0)
        else:
            blk_max = blk_sum = blk
        return (jnp.max(blk_max, axis=-1, keepdims=True),
                jnp.sum(blk_sum, axis=-1, keepdims=True))

    def _accumulate(x_ref, max_acc, sum_acc):
        k = pl.program_id(2)

        @pl.when(k == 0)
        def _init():
            max_acc[...] = jnp.full(max_acc.shape, -jnp.inf, max_acc.dtype)
            sum_acc[...] = jnp.zeros(sum_acc.shape, sum_acc.dtype)

        blk_max, blk_sum = _block_reduce(x_ref, k)
        max_acc[...] = jnp.maximum(max_acc[...], blk_max)
        sum_acc[...] = sum_acc[...] + blk_sum
        return k == pl.num_programs(2) - 1

    if lane_dense:
        def kernel(x_ref, o_ref, max_acc, sum_acc):
            is_last = _accumulate(x_ref, max_acc, sum_acc)

            @pl.when(is_last)
            def _finalize():
                # (c_tile, 2) -> (2, c_tile): one tiny XLU transpose so the
                # output block is lane-dense (channels on the 128-lane axis,
                # unmasked wide stores, single writeback DMA per cell).
                res = jnp.concatenate(
                    [max_acc[...], sum_acc[...] * inv_hw], axis=1)
                o_ref[0] = jnp.transpose(res).astype(o_ref.dtype)
        return kernel

    def kernel(x_ref, o_max_ref, o_avg_ref, max_acc, sum_acc):
        is_last = _accumulate(x_ref, max_acc, sum_acc)

        @pl.when(is_last)
        def _finalize():
            o_max_ref[0] = max_acc[...].astype(o_max_ref.dtype)
            o_avg_ref[0] = (sum_acc[...] * inv_hw).astype(o_avg_ref.dtype)
    return kernel


def _run_pool(x_flat, c_tile, hw_tile, needs_mask, vmem_limit,
              lane_dense, multi_buffer):
    N, C, HW = x_flat.shape
    grid = (N, pl.cdiv(C, c_tile), pl.cdiv(HW, hw_tile))

    if multi_buffer:
        # Small-block / small-HW regime: deepen input buffering to hide DMA
        # issue latency between short transfers.
        in_spec = pl.BlockSpec((1, c_tile, hw_tile), lambda n, c, k: (n, c, k),
                               pipeline_mode=pl.Buffered(3))
    else:
        in_spec = pl.BlockSpec((1, c_tile, hw_tile), lambda n, c, k: (n, c, k))

    kernel = _make_kernel(HW, hw_tile, needs_mask, lane_dense)

    if lane_dense:
        out_shape = jax.ShapeDtypeStruct((N, 2, C), x_flat.dtype)
        out_specs = pl.BlockSpec((1, 2, c_tile), lambda n, c, k: (n, 0, c))
    else:
        out_shape = (jax.ShapeDtypeStruct((N, C, 1), x_flat.dtype),
                     jax.ShapeDtypeStruct((N, C, 1), x_flat.dtype))
        out_specs = [pl.BlockSpec((1, c_tile, 1), lambda n, c, k: (n, c, 0)),
                     pl.BlockSpec((1, c_tile, 1), lambda n, c, k: (n, c, 0))]

    return pl.pallas_call(
        kernel,
        out_shape=out_shape,
        grid_spec=pltpu.PrefetchScalarGridSpec(
            num_scalar_prefetch=0,
            grid=grid,
            in_specs=[in_spec],
            out_specs=out_specs,
            scratch_shapes=[pltpu.VMEM((c_tile, 1), jnp.float32),
                            pltpu.VMEM((c_tile, 1), jnp.float32)],
        ),
        compiler_params=pltpu.CompilerParams(
            dimension_semantics=("parallel", "parallel", "arbitrary"),
            vmem_limit_bytes=int(vmem_limit),
        ),
    )(x_flat)


def adaptive_concat_pool2d(x, *, block_budget_bytes=None):
    """x: (N, C, H, W) float -> (N, 2*C, 1, 1); max channels first, then avg."""
    N, C, H, W = x.shape
    HW = H * W
    x_flat = x.reshape(N, C, HW)
    itemsize = jnp.dtype(x.dtype).itemsize

    budget, vmem_cap = _vmem_budget()
    if block_budget_bytes is not None:
        budget = int(block_budget_bytes)

    c_tile, hw_tile = _select_tiles(N, C, HW, itemsize, budget)
    needs_mask = (HW % hw_tile) != 0
    block_bytes = c_tile * hw_tile * itemsize
    # Double-buffered input block (+ headroom for buffering depth, scratch and
    # outputs), capped per generation so v7x's 64 MiB physical VMEM is safe.
    vmem_limit = min(max(32 * _MiB, 4 * block_bytes + 2 * _MiB), vmem_cap)
    multi_buffer = block_bytes <= 2 * _MiB

    try:
        out = _run_pool(x_flat, c_tile, hw_tile, needs_mask, vmem_limit,
                        lane_dense=True, multi_buffer=multi_buffer)
        packed = out.reshape(N, 2 * C)
    except Exception:
        # Conservative fallback (runs eagerly, so a Mosaic lowering failure of
        # the lane-dense finalize transpose or Buffered(3) pipeline mode is
        # caught here): two sublane-oriented outputs, concatenated outside the
        # kernel.  Numerics and tiling are identical.
        out_max, out_avg = _run_pool(x_flat, c_tile, hw_tile, needs_mask,
                                     vmem_limit, lane_dense=False,
                                     multi_buffer=False)
        packed = jnp.concatenate([out_max, out_avg], axis=1).reshape(N, 2 * C)

    return packed.reshape(N, 2 * C, 1, 1)


def _reference(x):
    N, C, H, W = x.shape
    ref_max = jnp.max(x, axis=(2, 3)).reshape(N, C, 1, 1)
    ref_avg = jnp.mean(x, axis=(2, 3)).reshape(N, C, 1, 1)
    return jnp.concatenate([ref_max, ref_avg], axis=1)


def _check(x, **kw):
    y = jax.block_until_ready(adaptive_concat_pool2d(x, **kw))
    ref = _reference(x)
    assert y.shape == ref.shape, (y.shape, ref.shape)
    assert jnp.allclose(y, ref, atol=1e-5, rtol=1e-5), (
        f"mismatch for shape {x.shape}: "
        f"max abs err {jnp.max(jnp.abs(y - ref))}")


if __name__ == "__main__":
    key = jax.random.PRNGKey(0)
    k1, k2, k3 = jax.random.split(key, 3)

    # Spec-sized case: N=2, C=4, 16x16 spatial (single full-image block).
    x = jax.random.normal(key, (2, 4, 16, 16), dtype=jnp.float32)
    _check(x)

    # Small-HW head regime (7x7, like a ResNet50 global-pool input).
    _check(jax.random.normal(k1, (2, 8, 7, 7), dtype=jnp.float32))

    # Mid-size channel count.
    _check(jax.random.normal(k2, (2, 256, 16, 16), dtype=jnp.float32))

    # Force the multi-step HW reduction + ragged-tail mask path with a tiny
    # artificial block budget (45*45 = 2025 is not a multiple of 128).
    _check(jax.random.normal(k3, (2, 8, 45, 45), dtype=jnp.float32),
           block_budget_bytes=32 * 1024)

    print("KERNEL_OK")
</pallas_src>

<mosaic_0001>
module attributes {stable_mosaic.version = 11 : i64} {
  func.func @kernel(%arg0: i32, %arg1: i32, %arg2: i32, %arg3: memref<1x4x256xf32, #tpu.memory_space<vmem>>, %arg4: memref<1x4x1xf32, #tpu.memory_space<vmem>>, %arg5: memref<1x4x1xf32, #tpu.memory_space<vmem>>, %arg6: memref<4x1xf32, #tpu.memory_space<vmem>>, %arg7: memref<4x1xf32, #tpu.memory_space<vmem>>) attributes {dimension_semantics = [#tpu.dimension_semantics<parallel>, #tpu.dimension_semantics<parallel>, #tpu.dimension_semantics<arbitrary>], iteration_bounds = array<i64: 2, 1, 1>, scalar_prefetch = 0 : i64, scratch_operands = 2 : i64, tpu.core_type = #tpu.core_type<tc>, window_params = [{transform_indices = @transform_0, window_bounds = array<i64: 1, 4, 256>}, {transform_indices = @transform_1, window_bounds = array<i64: 1, 4, 1>}, {transform_indices = @transform_2, window_bounds = array<i64: 1, 4, 1>}]} {
    %c0_i32 = arith.constant 0 : i32
    %0 = arith.cmpi eq, %arg2, %c0_i32 : i32
    %1 = arith.extui %0 : i1 to i32
    %c0_i32_0 = arith.constant 0 : i32
    %2 = arith.cmpi ne, %1, %c0_i32_0 : i32
    scf.if %2 {
      %cst_14 = arith.constant 0xFF800000 : f32
      %18 = vector.broadcast %cst_14 : f32 to vector<4x1xf32>
      %c0_15 = arith.constant 0 : index
      %c0_16 = arith.constant 0 : index
      %19 = vector.load %arg6[%c0_15, %c0_16] : memref<4x1xf32, #tpu.memory_space<vmem>>, vector<4x1xf32>
      tpu.vector_store %arg6[%c0_15, %c0_16], %18 {strides = array<i32>} : memref<4x1xf32, #tpu.memory_space<vmem>>, vector<4x1xf32>,
      %cst_17 = arith.constant 0.000000e+00 : f32
      %20 = vector.broadcast %cst_17 : f32 to vector<4x1xf32>
      %c0_18 = arith.constant 0 : index
      %c0_19 = arith.constant 0 : index
      %21 = vector.load %arg7[%c0_18, %c0_19] : memref<4x1xf32, #tpu.memory_space<vmem>>, vector<4x1xf32>
      tpu.vector_store %arg7[%c0_18, %c0_19], %20 {strides = array<i32>} : memref<4x1xf32, #tpu.memory_space<vmem>>, vector<4x1xf32>,
    } else {
    }
    %c0 = arith.constant 0 : index
    %c0_1 = arith.constant 0 : index
    %c0_2 = arith.constant 0 : index
    %3 = vector.load %arg3[%c0, %c0_1, %c0_2] : memref<1x4x256xf32, #tpu.memory_space<vmem>>, vector<1x4x256xf32>
    %4 = vector.shape_cast %3 : vector<1x4x256xf32> to vector<4x256xf32>
    %cst = arith.constant dense<0xFF800000> : vector<4xf32>
    %5 = vector.multi_reduction <maximumf>, %4, %cst [1] : vector<4x256xf32> to vector<4xf32>
    %6 = vector.shape_cast %5 : vector<4xf32> to vector<4x1xf32>
    %cst_3 = arith.constant dense<0.000000e+00> : vector<4xf32>
    %7 = vector.multi_reduction <add>, %4, %cst_3 [1] : vector<4x256xf32> to vector<4xf32>
    %8 = vector.shape_cast %7 : vector<4xf32> to vector<4x1xf32>
    %c0_4 = arith.constant 0 : index
    %c0_5 = arith.constant 0 : index
    %9 = vector.load %arg6[%c0_4, %c0_5] : memref<4x1xf32, #tpu.memory_space<vmem>>, vector<4x1xf32>
    %10 = arith.maximumf %9, %6 : vector<4x1xf32>
    %c0_6 = arith.constant 0 : index
    %c0_7 = arith.constant 0 : index
    %11 = vector.load %arg6[%c0_6, %c0_7] : memref<4x1xf32, #tpu.memory_space<vmem>>, vector<4x1xf32>
    tpu.vector_store %arg6[%c0_6, %c0_7], %10 {strides = array<i32>} : memref<4x1xf32, #tpu.memory_space<vmem>>, vector<4x1xf32>,
    %c0_8 = arith.constant 0 : index
    %c0_9 = arith.constant 0 : index
    %12 = vector.load %arg7[%c0_8, %c0_9] : memref<4x1xf32, #tpu.memory_space<vmem>>, vector<4x1xf32>
    %13 = arith.addf %12, %8 : vector<4x1xf32>
    %c0_10 = arith.constant 0 : index
    %c0_11 = arith.constant 0 : index
    %14 = vector.load %arg7[%c0_10, %c0_11] : memref<4x1xf32, #tpu.memory_space<vmem>>, vector<4x1xf32>
    tpu.vector_store %arg7[%c0_10, %c0_11], %13 {strides = array<i32>} : memref<4x1xf32, #tpu.memory_space<vmem>>, vector<4x1xf32>,
    %c0_i32_12 = arith.constant 0 : i32
    %15 = arith.cmpi eq, %arg2, %c0_i32_12 : i32
    %16 = arith.extui %15 : i1 to i32
    %c0_i32_13 = arith.constant 0 : i32
    %17 = arith.cmpi ne, %16, %c0_i32_13 : i32
    scf.if %17 {
      %c0_14 = arith.constant 0 : index
      %c0_15 = arith.constant 0 : index
      %18 = vector.load %arg6[%c0_14, %c0_15] : memref<4x1xf32, #tpu.memory_space<vmem>>, vector<4x1xf32>
      %c0_16 = arith.constant 0 : index
      %c0_17 = arith.constant 0 : index
      %c0_18 = arith.constant 0 : index
      %19 = vector.load %arg4[%c0_16, %c0_17, %c0_18] : memref<1x4x1xf32, #tpu.memory_space<vmem>>, vector<1x4x1xf32>
      %20 = vector.shape_cast %19 : vector<1x4x1xf32> to vector<4x1xf32>
      %21 = vector.shape_cast %18 : vector<4x1xf32> to vector<1x4x1xf32>
      tpu.vector_store %arg4[%c0_16, %c0_17, %c0_18], %21 {strides = array<i32>} : memref<1x4x1xf32, #tpu.memory_space<vmem>>, vector<1x4x1xf32>,
      %c0_19 = arith.constant 0 : index
      %c0_20 = arith.constant 0 : index
      %22 = vector.load %arg7[%c0_19, %c0_20] : memref<4x1xf32, #tpu.memory_space<vmem>>, vector<4x1xf32>
      %cst_21 = arith.constant 3.906250e-03 : f32
      %23 = vector.broadcast %cst_21 : f32 to vector<4x1xf32>
      %24 = arith.mulf %22, %23 : vector<4x1xf32>
      %c0_22 = arith.constant 0 : index
      %c0_23 = arith.constant 0 : index
      %c0_24 = arith.constant 0 : index
      %25 = vector.load %arg5[%c0_22, %c0_23, %c0_24] : memref<1x4x1xf32, #tpu.memory_space<vmem>>, vector<1x4x1xf32>
      %26 = vector.shape_cast %25 : vector<1x4x1xf32> to vector<4x1xf32>
      %27 = vector.shape_cast %24 : vector<4x1xf32> to vector<1x4x1xf32>
      tpu.vector_store %arg5[%c0_22, %c0_23, %c0_24], %27 {strides = array<i32>} : memref<1x4x1xf32, #tpu.memory_space<vmem>>, vector<1x4x1xf32>,
    } else {
    }
    return
  }
  func.func @transform_0(%arg0: i32, %arg1: i32, %arg2: i32) -> (i32, i32, i32) {
    %c0_i32 = arith.constant 0 : i32
    return %arg0, %arg1, %arg2 : i32, i32, i32
  }
  func.func @transform_1(%arg0: i32, %arg1: i32, %arg2: i32) -> (i32, i32, i32) {
    %c0_i32 = arith.constant 0 : i32
    %c0_i32_0 = arith.constant 0 : i32
    return %arg0, %arg1, %c0_i32 : i32, i32, i32
  }
  func.func @transform_2(%arg0: i32, %arg1: i32, %arg2: i32) -> (i32, i32, i32) {
    %c0_i32 = arith.constant 0 : i32
    %c0_i32_0 = arith.constant 0 : i32
    return %arg0, %arg1, %c0_i32 : i32, i32, i32
  }
}

</mosaic_0001>

<llo_original>
// kernel: tpu_custom_call.1
$region0: #{tpu_custom_call.1}
  #allocation0 [shape = 'u32[]', space=smem, size = 0x4, offset = 0x4, fixed_abs, tag = 'smem constant byte address 0x4 - core index']
  #allocation1 [shape = 'u32[144,128]{1,0:T(1,128)}', space=vmem, size = 0x12000, scoped, tag = 'internal scratch']
  #allocation2 [shape = 'f32[4,1]{1,0:T(4,128)}', space=vmem, size = 0x800, scoped, tag = 'scratch operand']
  #allocation3 [shape = 'f32[4,1]{1,0:T(4,128)}', space=vmem, size = 0x800, scoped, tag = 'scratch operand']
  %s0 = inlined_call_operand.hbm [shape: f32[2,4,256], index: 0, kind: input, shape index: {}]
  %s1 = inlined_call_operand.vmem [shape: f32[2,4,1], index: 1, kind: output, shape index: {0}]
  %s2 = inlined_call_operand.vmem [shape: f32[2,4,1], index: 2, kind: output, shape index: {1}]
  %3 = xla_tuple %s1, %s2
  %s4 = sld [smem:[#allocation0]]
  $region57: #{tpu_custom_call.1} parent=0
    _
  %s6 = ssub.s32 1, %s4
  %s7 = scalar_select 0, %s6, %s4
  $region1: #{tpu_custom_call.1} parent=0
    #allocation4 [shape = 'u8[8192]{0}', space=vmem, size = 0x2000, scoped, tag = 'input window, operand 0']
    #allocation5 [shape = 's32[2]{0}', space=sflag, size = 0x8, scoped, tag = 'scoped memory for tpu_custom_call.1']
    %8 = vsyncpa [#allocation5], 0
    %s9 = scalar_lea.sflag [#allocation5], 1
    %10 = vsyncpa %s9, 0
    loop: start=0, step=1, limit=4
    $region2: #{tpu_custom_call.1} parent=1 // loop_pre_header
      _
    $region3: #{tpu_custom_call.1} parent=1 // loop_header
      %s12 = sphi 0, %s16
      %p13 = scmp.ge.s32.totalorder %s12, 4
      %s19 = sphi 0, %s38
      %s20 = sphi 0, %s34
      %s21 = sphi 0, %s30
      %s22 = sphi 0, %s19
      %s23 = sphi 0, %s20
      %s24 = sphi 0, %s21
      %s25 = sphi 0, %s22
      %s26 = sphi 0, %s23
      %s27 = sphi 0, %s24
      %s45 = sphi 0, %s47
      %s48 = sphi 0, %s45
      %s49 = sphi 0, %s48
      %s65 = sphi 0, %s49
      %s73 = sphi 0, %s75
      %s76 = sphi 0, %s73
      %s77 = sphi 0, %s76
      %s93 = sphi 0, %s77
      %s101 = sphi 0, %s103
      %s104 = sphi 0, %s101
      %s105 = sphi 0, %s104
      %s121 = sphi 0, %s105
    $region4: #{tpu_custom_call.1} parent=1 // loop_header_branch
      %15 = sbr.rel (%p13) target = $region8
    $region5: #{tpu_custom_call.1} parent=1 // loop_body
      %s17 = ssub.s32 %s12, 1
      %s18 = ssub.s32 %s12, 2
      %s28 = sadd.s32 1, %s21
      %p29 = scmp.ge.s32.totalorder %s28, 1
      %s30 = scalar_select %p29, 0, %s28
      %s31 = sadd.s32 1, %s20
      %s32 = scalar_select %p29, %s31, %s20
      %p33 = scmp.ge.s32.totalorder %s32, 1
      %s34 = scalar_select %p33, 0, %s32
      %s35 = sadd.s32 1, %s19
      %s36 = scalar_select %p33, %s35, %s19
      %p37 = scmp.ge.s32.totalorder %s36, 2
      %s38 = scalar_select %p37, 0, %s36
      %s39 = ssub.s32 %s19, %s38
      %s40 = ssub.s32 %s20, %s34
      %s41 = sor.u32 %s39, %s40
      %s42 = ssub.s32 %s21, %s30
      %s43 = sor.u32 %s41, %s42
      %p44 = scmp.eq.s32.totalorder %s43, 0
      %s46 = sadd.s32 %s45, 1
      %s47 = scalar_select %p44, %s45, %s46
      %p50 = pneg %p44
      %p51 = scmp.eq.s32.totalorder %s12, 1
      %p52 = por %p50, %p51
      %p53 = scmp.ne.s32.totalorder %s45, %s48
      %p54 = scmp.eq.s32.totalorder %s12, 0
      %p55 = por %p53, %p54
      %p56 = scmp.ne.s32.totalorder %s45, %s48
      %p57 = scmp.eq.s32.totalorder %s17, 1
      %p58 = por %p56, %p57
      %p59 = scmp.ne.s32.totalorder %s48, %s49
      %p60 = scmp.eq.s32.totalorder %s17, 0
      %p61 = por %p59, %p60
      %p62 = scmp.ne.s32.totalorder %s48, %s49
      %p63 = scmp.eq.s32.totalorder %s18, 1
      %p64 = por %p62, %p63
      %p66 = scmp.ne.s32.totalorder %s49, %s65
      %p67 = scmp.eq.s32.totalorder %s18, 0
      %p68 = por %p66, %p67
      %s69 = ssub.s32 %s19, %s38
      %s70 = ssub.s32 %s20, %s34
      %s71 = sor.u32 %s69, %s70
      %p72 = scmp.eq.s32.totalorder %s71, 0
      %s74 = sadd.s32 %s73, 1
      %s75 = scalar_select %p72, %s73, %s74
      %p78 = pneg %p72
      %p79 = scmp.eq.s32.totalorder %s12, 1
      %p80 = por %p78, %p79
      %p81 = scmp.ne.s32.totalorder %s73, %s76
      %p82 = scmp.eq.s32.totalorder %s12, 0
      %p83 = por %p81, %p82
      %p84 = scmp.ne.s32.totalorder %s73, %s76
      %p85 = scmp.eq.s32.totalorder %s17, 1
      %p86 = por %p84, %p85
      %p87 = scmp.ne.s32.totalorder %s76, %s77
      %p88 = scmp.eq.s32.totalorder %s17, 0
      %p89 = por %p87, %p88
      %p90 = scmp.ne.s32.totalorder %s76, %s77
      %p91 = scmp.eq.s32.totalorder %s18, 1
      %p92 = por %p90, %p91
      %p94 = scmp.ne.s32.totalorder %s77, %s93
      %p95 = scmp.eq.s32.totalorder %s18, 0
      %p96 = por %p94, %p95
      %s97 = ssub.s32 %s19, %s38
      %s98 = ssub.s32 %s20, %s34
      %s99 = sor.u32 %s97, %s98
      %p100 = scmp.eq.s32.totalorder %s99, 0
      %s102 = sadd.s32 %s101, 1
      %s103 = scalar_select %p100, %s101, %s102
      %p106 = pneg %p100
      %p107 = scmp.eq.s32.totalorder %s12, 1
      %p108 = por %p106, %p107
      %p109 = scmp.ne.s32.totalorder %s101, %s104
      %p110 = scmp.eq.s32.totalorder %s12, 0
      %p111 = por %p109, %p110
      %p112 = scmp.ne.s32.totalorder %s101, %s104
      %p113 = scmp.eq.s32.totalorder %s17, 1
      %p114 = por %p112, %p113
      %p115 = scmp.ne.s32.totalorder %s104, %s105
      %p116 = scmp.eq.s32.totalorder %s17, 0
      %p117 = por %p115, %p116
      %p118 = scmp.ne.s32.totalorder %s104, %s105
      %p119 = scmp.eq.s32.totalorder %s18, 1
      %p120 = por %p118, %p119
      %p122 = scmp.ne.s32.totalorder %s105, %s121
      %p123 = scmp.eq.s32.totalorder %s18, 0
      %p124 = por %p122, %p123
      %p125 = scmp.le.s32.totalorder 1, %s12
      %p126 = scmp.lt.s32.totalorder %s12, 3
      %p127 = pnand %p125, %p126
      %p128 = pneg %p127
      // Predicated region
      $region9: #{tpu_custom_call.1} parent=5 // pred_check
        _
      $region10: #{tpu_custom_call.1} parent=5 // pred_check_branch
        %130 = sbr.rel (%p127) target = $region12
      $region11: #{tpu_custom_call.1} parent=5 // pred_region
        %s131 = ssub.s32 %s12, 1
      $region12: #{tpu_custom_call.1} parent=5 // pred_fallthru
        _
      %p132 = scmp.lt.s32.totalorder %s12, 2
      // Predicated region
      $region13: #{tpu_custom_call.1} parent=5 // pred_check
        %p133 = pneg %p132
      $region14: #{tpu_custom_call.1} parent=5 // pred_check_branch
        %135 = sbr.rel (%p133) target = $region16
      $region15: #{tpu_custom_call.1} parent=5 // pred_region
        // Predicated region
        $region17: #{tpu_custom_call.1} parent=15 // pred_check
          %p136 = pneg %p55
        $region18: #{tpu_custom_call.1} parent=15 // pred_check_branch
          %138 = sbr.rel (%p136) target = $region20
        $region19: #{tpu_custom_call.1} parent=15 // pred_region
          %s139 = sand.u32 %s45, 1
          %s140 = scalar_lea.sflag [#allocation5], %s139
          %s141 = sand.u32 %s45, 1
          %s142 = smul.addr %s141, 8
          %s143 = scalar_lea.vmem [#allocation4], %s142
          %s144 = smul.u32 2, %s21
          %s146 = ssub.s32 128, 128
          %147 = vsyncadd %s140, %s146
          %s148 = smul.addr %s20, 2
          %s149 = sadd.s32 %s144, %s148
          %s150 = smul.addr %s19, 2
          %s151 = sadd.s32 %s149, %s150
          %s152 = smul.addr %s151, 64
          %s153 = scalar_lea.hbm %s0, %s152
          %s155 = sshll.u32 %s143, 4
          %s156 = int_to_ptr.vmem [resolvable:$true] %s155
          %158 = dma.hbm_to_vmem [thread:$0]  %s153, 128, %s156, %s140
        $region20: #{tpu_custom_call.1} parent=15 // pred_fallthru
          _
      $region16: #{tpu_custom_call.1} parent=5 // pred_fallthru
        _
      %p159 = scmp.le.s32.totalorder 1, %s12
      %p160 = scmp.lt.s32.totalorder %s12, 3
      %p161 = pnand %p159, %p160
      %p162 = pneg %p161
      // Predicated region
      $region21: #{tpu_custom_call.1} parent=5 // pred_check
        _
      $region22: #{tpu_custom_call.1} parent=5 // pred_check_branch
        %164 = sbr.rel (%p161) target = $region24
      $region23: #{tpu_custom_call.1} parent=5 // pred_region
        %s165 = ssub.s32 %s12, 1
        %s166 = sand.u32 %s48, 1
        %s167 = scalar_lea.sflag [#allocation5], %s166
        %s168 = sand.u32 %s48, 1
        %s169 = smul.addr %s168, 8
        %s170 = scalar_lea.vmem [#allocation4], %s169
        // Predicated region
        $region25: #{tpu_custom_call.1} parent=23 // pred_check
          %p171 = pneg %p61
        $region26: #{tpu_custom_call.1} parent=23 // pred_check_branch
          %173 = sbr.rel (%p171) target = $region28
        $region27: #{tpu_custom_call.1} parent=23 // pred_region
          %174 = dma.done %s167, 128
        $region28: #{tpu_custom_call.1} parent=23 // pred_fallthru
          _
        %s175 = sand.u32 %s48, 1
        %s176 = scalar_lea.sflag [#allocation5], %s175
        %s177 = sand.u32 %s48, 1
        %s178 = smul.addr %s177, 8
        %s179 = scalar_lea.vmem [#allocation4], %s178
        %p180 = pneg %p61
        %p181 = pneg %p58
        %p182 = pneg %p89
        %p183 = pneg %p86
        %p184 = scmp.lt.s32.totalorder %s22, 1
        %s185 = scalar_select %p184, %s22, 1
        %p186 = scmp.lt.s32.totalorder %s23, 0
        %s187 = scalar_select %p186, %s23, 0
        %s188 = sadd.s32 %s187, %s185
        %s189 = smul.addr %s188, 4
        %s190 = scalar_lea.vmem %s1, %s189
        %p191 = pneg %p117
        %p192 = pneg %p114
        %p193 = scmp.lt.s32.totalorder %s22, 1
        %s194 = scalar_select %p193, %s22, 1
        %p195 = scmp.lt.s32.totalorder %s23, 0
        %s196 = scalar_select %p195, %s23, 0
        %s197 = sadd.s32 %s196, %s194
        %s198 = smul.addr %s197, 4
        %s199 = scalar_lea.vmem %s2, %s198
        %s200 = smul.u32 2, %s24
        %p201 = scmp.lt.s32.totalorder %s22, 1
        %s202 = scalar_select %p201, %s22, 1
        %p203 = scmp.lt.s32.totalorder %s23, 0
        %s204 = scalar_select %p203, %s23, 0
        %s205 = sadd.s32 %s204, %s202
        %s206 = smul.addr %s205, 4
        %s207 = scalar_lea.vmem %s1, %s206
        %p208 = scmp.lt.s32.totalorder %s22, 1
        %s209 = scalar_select %p208, %s22, 1
        %p210 = scmp.lt.s32.totalorder %s23, 0
        %s211 = scalar_select %p210, %s23, 0
        %s212 = sadd.s32 %s211, %s209
        %s213 = smul.addr %s212, 4
        %s214 = scalar_lea.vmem %s2, %s213
        %p215 = scmp.eq.s32.totalorder %s24, 0
        // Predicated region
        $region29: #{tpu_custom_call.1} parent=23 // pred_check
          %p216 = pneg %p215
        $region30: #{tpu_custom_call.1} parent=23 // pred_check_branch
          %218 = sbr.rel (%p216) target = $region32
        $region31: #{tpu_custom_call.1} parent=23 // pred_region
          %vm219 = vcmask 3072
          %220 = vst.msk [vmem:[#allocation2] sm:$0xf] %vm219, -inf
          %221 = vst.msk [vmem:[#allocation3] sm:$0xf] %vm219, 0.0
        $region32: #{tpu_custom_call.1} parent=23 // pred_fallthru
          _
        %v222 = vld [vmem:[%s170] sm:$0xff]
        %v224 = vcombine.high %v222, %v222
        %vm226 = vcmask 1043456
        %v227 = vsel %vm226, %v222, -inf
        %v228 = vsel %vm226, %v224, -inf
        %v229 = vmax.f32 %v227, %v228
        %230 = vmax.xlane.f32.xlu0 %v229
        %v231 = vpop.xlane.xlu0 %230
        %v232 = vsel %vm226, %v222, 0.0
        %v233 = vsel %vm226, %v224, 0.0
        %v234 = vadd.f32 %v232, %v233
        %235 = vadd.xlane.f32.xlu0 %v234
        %v236 = vpop.xlane.xlu0 %235
        %v237 = vld [vmem:[#allocation2] sm:$0xf]
        %v238 = vmax.f32 %v237, %v231
        %vm239 = vcmask 3072
        %240 = vst.msk [vmem:[#allocation2] sm:$0xf] %vm239, %v238
        %v241 = vld [vmem:[#allocation3] sm:$0xf]
        %v242 = vadd.f32 %v241, %v236
        %243 = vst.msk [vmem:[#allocation3] sm:$0xf] %vm239, %v242
        // Predicated region
        $region33: #{tpu_custom_call.1} parent=23 // pred_check
          %p244 = pneg %p215
        $region34: #{tpu_custom_call.1} parent=23 // pred_check_branch
          %246 = sbr.rel (%p244) target = $region36
        $region35: #{tpu_custom_call.1} parent=23 // pred_region
          %v247 = vld [vmem:[#allocation2] sm:$0xf]
          %248 = vst.msk [vmem:[%s207] sm:$0xf] %vm239, %v247
          %v249 = vld [vmem:[#allocation3] sm:$0xf]
          %v250 = vmul.f32 %v249, 0.00390625
          %251 = vst.msk [vmem:[%s214] sm:$0xf] %vm239, %v250
        $region36: #{tpu_custom_call.1} parent=23 // pred_fallthru
          _
        %p252 = scmp.lt.s32.totalorder %s22, 1
        %s253 = scalar_select %p252, %s22, 1
        %p254 = scmp.lt.s32.totalorder %s23, 0
        %s255 = scalar_select %p254, %s23, 0
        %s256 = sadd.s32 %s255, %s253
        %s257 = smul.addr %s256, 4
        %s258 = scalar_lea.vmem %s1, %s257
        %p259 = scmp.lt.s32.totalorder %s22, 1
        %s260 = scalar_select %p259, %s22, 1
        %p261 = scmp.lt.s32.totalorder %s23, 0
        %s262 = scalar_select %p261, %s23, 0
        %s263 = sadd.s32 %s262, %s260
        %s264 = smul.addr %s263, 4
        %s265 = scalar_lea.vmem %s2, %s264
        // Predicated region
        $region37: #{tpu_custom_call.1} parent=23 // pred_check
          %p266 = pneg %p86
        $region38: #{tpu_custom_call.1} parent=23 // pred_check_branch
          %268 = sbr.rel (%p266) target = $region40
        $region39: #{tpu_custom_call.1} parent=23 // pred_region
          _
        $region40: #{tpu_custom_call.1} parent=23 // pred_fallthru
          _
        // Predicated region
        $region41: #{tpu_custom_call.1} parent=23 // pred_check
          %p269 = pneg %p114
        $region42: #{tpu_custom_call.1} parent=23 // pred_check_branch
          %271 = sbr.rel (%p269) target = $region44
        $region43: #{tpu_custom_call.1} parent=23 // pred_region
          _
        $region44: #{tpu_custom_call.1} parent=23 // pred_fallthru
          _
      $region24: #{tpu_custom_call.1} parent=5 // pred_fallthru
        _
      %p272 = scmp.le.s32.totalorder 2, %s12
      // Predicated region
      $region45: #{tpu_custom_call.1} parent=5 // pred_check
        %p273 = pneg %p272
      $region46: #{tpu_custom_call.1} parent=5 // pred_check_branch
        %275 = sbr.rel (%p273) target = $region48
      $region47: #{tpu_custom_call.1} parent=5 // pred_region
        %s276 = ssub.s32 %s12, 2
        // Predicated region
        $region49: #{tpu_custom_call.1} parent=47 // pred_check
          %p277 = pneg %p92
        $region50: #{tpu_custom_call.1} parent=47 // pred_check_branch
          %279 = sbr.rel (%p277) target = $region52
        $region51: #{tpu_custom_call.1} parent=47 // pred_region
          %p280 = scmp.lt.s32.totalorder %s25, 1
          %s281 = scalar_select %p280, %s25, 1
          %p282 = scmp.lt.s32.totalorder %s26, 0
          %s283 = scalar_select %p282, %s26, 0
          %s284 = sadd.s32 %s283, %s281
          %s285 = smul.addr %s284, 4
          %s286 = scalar_lea.vmem %s1, %s285
        $region52: #{tpu_custom_call.1} parent=47 // pred_fallthru
          _
        // Predicated region
        $region53: #{tpu_custom_call.1} parent=47 // pred_check
          %p287 = pneg %p120
        $region54: #{tpu_custom_call.1} parent=47 // pred_check_branch
          %289 = sbr.rel (%p287) target = $region56
        $region55: #{tpu_custom_call.1} parent=47 // pred_region
          %p290 = scmp.lt.s32.totalorder %s25, 1
          %s291 = scalar_select %p290, %s25, 1
          %p292 = scmp.lt.s32.totalorder %s26, 0
          %s293 = scalar_select %p292, %s26, 0
          %s294 = sadd.s32 %s293, %s291
          %s295 = smul.addr %s294, 4
          %s296 = scalar_lea.vmem %s2, %s295
        $region56: #{tpu_custom_call.1} parent=47 // pred_fallthru
          _
      $region48: #{tpu_custom_call.1} parent=5 // pred_fallthru
        _
    $region6: #{tpu_custom_call.1} parent=1 // loop_footer
      %s16 = sadd.s32 1, %s12
    $region7: #{tpu_custom_call.1} parent=1 // loop_footer_branch
      %11 = sbr.rel target = $region3
    $region8: #{tpu_custom_call.1} parent=1 // loop_exit
      _
    %297 = vsyncpa [#allocation5], 1
    %s298 = scalar_lea.sflag [#allocation5], 1
    %299 = vsyncpa %s298, 1

</llo_original>
